<compile_context>
chip_gen: v5e
topology: v5e:2x2
jax: 0.10.0
libtpu: 0.0.40
codegen_flags: <defaults>
</compile_context>

<pallas_src>
import jax
import jax.numpy as jnp
from jax.experimental import pallas as pl
from jax.experimental.pallas import tpu as pltpu

IN_FEATURES = 32   # stands in for X_train.shape[1]
H1, H2, OUT = 64, 32, 1
TB = 8192          # batch tile (lanes per grid step); must be a multiple of 128


def mlp_kernel(x_ref, w1_ref, b1_ref, w2_ref, b2_ref, w3_ref, b3_ref, o_ref):
    # x_ref: (F, TB) bf16 -- batch on lanes (dense).
    # fc1 + relu: bf16 MXU operands, f32 accumulation / epilogue.
    h1 = jnp.dot(w1_ref[...], x_ref[...],
                 preferred_element_type=jnp.float32)            # (H1, TB)
    h1 = jnp.maximum(h1 + b1_ref[...], 0.0)

    # fc2 + relu: re-cast activation to bf16 for the MXU, accumulate in f32.
    h2 = jnp.dot(w2_ref[...], h1.astype(jnp.bfloat16),
                 preferred_element_type=jnp.float32)            # (H2, TB)
    h2 = jnp.maximum(h2 + b2_ref[...], 0.0)

    # fc3: plain (1,H2) @ (H2,TB) -> lane-dense (1,TB) row, f32 head.
    o = jnp.dot(w3_ref[...], h2,
                preferred_element_type=jnp.float32)             # (1, TB)
    o_ref[...] = (o + b3_ref[0, 0]).astype(o_ref.dtype)


def nn_y_dro_forward(x, params, tb=TB):
    """x: (B, F) f32 -> (B, 1) f32.  `tb` must be a multiple of 128 (or >= B)."""
    w1, b1, w2, b2, w3, b3 = params          # PyTorch layout: w (out,in), b (out,1)
    B, F = x.shape
    tb = min(tb, B)                          # block == full dim when B < tb
    n_tiles = pl.cdiv(B, tb)                 # ragged last block handled by Pallas

    # Single fused producer pass over x: transpose + cast (lane dim = batch).
    x_t = x.T.astype(jnp.bfloat16)           # (F, B)
    w1_bf = w1.astype(jnp.bfloat16)          # (H1, F)  -- tiny, VMEM-resident
    w2_bf = w2.astype(jnp.bfloat16)          # (H2, H1)

    out = pl.pallas_call(
        mlp_kernel,
        out_shape=jax.ShapeDtypeStruct((1, B), jnp.float32),
        grid=(n_tiles,),
        in_specs=[
            pl.BlockSpec((F, tb), lambda i: (0, i)),     # x tile (pipelined)
            pl.BlockSpec((H1, F), lambda i: (0, 0)),     # w1: resident
            pl.BlockSpec((H1, 1), lambda i: (0, 0)),     # b1 column: resident
            pl.BlockSpec((H2, H1), lambda i: (0, 0)),    # w2: resident
            pl.BlockSpec((H2, 1), lambda i: (0, 0)),     # b2 column: resident
            pl.BlockSpec((OUT, H2), lambda i: (0, 0)),   # w3 row: resident (f32)
            pl.BlockSpec(memory_space=pltpu.MemorySpace.SMEM),  # b3 scalar
        ],
        out_specs=pl.BlockSpec((1, tb), lambda i: (0, i)),       # lane-dense store
        compiler_params=pltpu.CompilerParams(
            dimension_semantics=("parallel",)),          # shards batch on v7x's 2 TCs
    )(x_t, w1_bf, b1, w2_bf, b2, w3, b3)

    return out[0, :, None]                    # (B, 1)


def init_params(key, in_features=IN_FEATURES):
    # Deterministic init mirroring PyTorch Linear default (uniform +-1/sqrt(fan_in)).
    ks = jax.random.split(key, 6)

    def lin(kw, kb, fan_in, fan_out):
        bound = 1.0 / (fan_in ** 0.5)
        w = jax.random.uniform(kw, (fan_out, fan_in), jnp.float32, -bound, bound)
        b = jax.random.uniform(kb, (fan_out, 1), jnp.float32, -bound, bound)
        return w, b

    w1, b1 = lin(ks[0], ks[1], in_features, H1)   # (64, F),  (64, 1)
    w2, b2 = lin(ks[2], ks[3], H1, H2)            # (32, 64), (32, 1)
    w3, b3 = lin(ks[4], ks[5], H2, OUT)           # (1, 32),  (1, 1)
    return w1, b1, w2, b2, w3, b3


def reference_forward(x, params):
    # Pure-JAX reference with the same bf16-operand / f32-accumulate recipe.
    w1, b1, w2, b2, w3, b3 = params
    h1 = jnp.maximum(
        jnp.dot(x.astype(jnp.bfloat16), w1.T.astype(jnp.bfloat16),
                preferred_element_type=jnp.float32) + b1[:, 0], 0.0)
    h2 = jnp.maximum(
        jnp.dot(h1.astype(jnp.bfloat16), w2.T.astype(jnp.bfloat16),
                preferred_element_type=jnp.float32) + b2[:, 0], 0.0)
    return jnp.dot(h2, w3.T, preferred_element_type=jnp.float32) + b3[0, 0]


if __name__ == "__main__":
    key = jax.random.PRNGKey(0)
    kx, kx2, kp = jax.random.split(key, 3)
    params = init_params(kp)

    # Case 1: small batch (single tile, B < tb).
    B = 8
    x = jax.random.normal(kx, (B, IN_FEATURES), jnp.float32)
    out = jax.block_until_ready(nn_y_dro_forward(x, params))
    ref = reference_forward(x, params)
    assert out.shape == (B, OUT)
    assert jnp.allclose(out, ref, atol=1e-2, rtol=1e-2), \
        float(jnp.max(jnp.abs(out - ref)))

    # Case 2: multi-tile + ragged last block (B % tb != 0), small tb to keep
    # the test shapes small while exercising the pad-free ragged-edge path.
    B2 = 300
    x2 = jax.random.normal(kx2, (B2, IN_FEATURES), jnp.float32)
    out2 = jax.block_until_ready(nn_y_dro_forward(x2, params, tb=128))
    ref2 = reference_forward(x2, params)
    assert out2.shape == (B2, OUT)
    assert jnp.allclose(out2, ref2, atol=1e-2, rtol=1e-2), \
        float(jnp.max(jnp.abs(out2 - ref2)))

    print("KERNEL_OK")
</pallas_src>

<mosaic_0001>
module attributes {stable_mosaic.version = 11 : i64} {
  func.func @mlp_kernel(%arg0: i32, %arg1: memref<32x8xbf16, #tpu.memory_space<vmem>>, %arg2: memref<64x32xbf16, #tpu.memory_space<vmem>>, %arg3: memref<64x1xf32, #tpu.memory_space<vmem>>, %arg4: memref<32x64xbf16, #tpu.memory_space<vmem>>, %arg5: memref<32x1xf32, #tpu.memory_space<vmem>>, %arg6: memref<1x32xf32, #tpu.memory_space<vmem>>, %arg7: memref<1x1xf32, #tpu.memory_space<smem>>, %arg8: memref<1x8xf32, #tpu.memory_space<vmem>>) attributes {dimension_semantics = [#tpu.dimension_semantics<parallel>], iteration_bounds = array<i64: 1>, scalar_prefetch = 0 : i64, scratch_operands = 0 : i64, tpu.core_type = #tpu.core_type<tc>, window_params = [{transform_indices = @transform_0, window_bounds = array<i64: 32, 8>}, {pipeline_mode = #tpu.pipeline_mode<synchronous>, transform_indices = @transform_1, window_bounds = array<i64: 64, 32>}, {pipeline_mode = #tpu.pipeline_mode<synchronous>, transform_indices = @transform_2, window_bounds = array<i64: 64, 1>}, {pipeline_mode = #tpu.pipeline_mode<synchronous>, transform_indices = @transform_3, window_bounds = array<i64: 32, 64>}, {pipeline_mode = #tpu.pipeline_mode<synchronous>, transform_indices = @transform_4, window_bounds = array<i64: 32, 1>}, {pipeline_mode = #tpu.pipeline_mode<synchronous>, transform_indices = @transform_5, window_bounds = array<i64: 1, 32>}, {transform_indices = @transform_6, window_bounds = array<i64: 1, 1>}, {transform_indices = @transform_7, window_bounds = array<i64: 1, 8>}]} {
    %c0 = arith.constant 0 : index
    %c0_0 = arith.constant 0 : index
    %0 = vector.load %arg2[%c0, %c0_0] : memref<64x32xbf16, #tpu.memory_space<vmem>>, vector<64x32xbf16>
    %c0_1 = arith.constant 0 : index
    %c0_2 = arith.constant 0 : index
    %1 = vector.load %arg1[%c0_1, %c0_2] : memref<32x8xbf16, #tpu.memory_space<vmem>>, vector<32x8xbf16>
    %cst = arith.constant dense<0.000000e+00> : vector<64x8xf32>
    %2 = tpu.matmul %0, %1, %cst {dimension_numbers = #tpu.dot_dimension_numbers<[1], [0], [0], [1], [0, 0, 1, 1], [], []>} : vector<64x32xbf16>, vector<32x8xbf16>, vector<64x8xf32> -> vector<64x8xf32>
    %c0_3 = arith.constant 0 : index
    %c0_4 = arith.constant 0 : index
    %3 = vector.load %arg3[%c0_3, %c0_4] : memref<64x1xf32, #tpu.memory_space<vmem>>, vector<64x1xf32>
    %4 = vector.broadcast %3 : vector<64x1xf32> to vector<64x8xf32>
    %5 = arith.addf %2, %4 : vector<64x8xf32>
    %cst_5 = arith.constant 0.000000e+00 : f32
    %6 = vector.broadcast %cst_5 : f32 to vector<64x8xf32>
    %7 = arith.maximumf %5, %6 : vector<64x8xf32>
    %c0_6 = arith.constant 0 : index
    %c0_7 = arith.constant 0 : index
    %8 = vector.load %arg4[%c0_6, %c0_7] : memref<32x64xbf16, #tpu.memory_space<vmem>>, vector<32x64xbf16>
    %9 = arith.truncf %7 : vector<64x8xf32> to vector<64x8xbf16>
    %cst_8 = arith.constant dense<0.000000e+00> : vector<32x8xf32>
    %10 = tpu.matmul %8, %9, %cst_8 {dimension_numbers = #tpu.dot_dimension_numbers<[1], [0], [0], [1], [0, 0, 1, 1], [], []>} : vector<32x64xbf16>, vector<64x8xbf16>, vector<32x8xf32> -> vector<32x8xf32>
    %c0_9 = arith.constant 0 : index
    %c0_10 = arith.constant 0 : index
    %11 = vector.load %arg5[%c0_9, %c0_10] : memref<32x1xf32, #tpu.memory_space<vmem>>, vector<32x1xf32>
    %12 = vector.broadcast %11 : vector<32x1xf32> to vector<32x8xf32>
    %13 = arith.addf %10, %12 : vector<32x8xf32>
    %cst_11 = arith.constant 0.000000e+00 : f32
    %14 = vector.broadcast %cst_11 : f32 to vector<32x8xf32>
    %15 = arith.maximumf %13, %14 : vector<32x8xf32>
    %c0_12 = arith.constant 0 : index
    %c0_13 = arith.constant 0 : index
    %16 = vector.load %arg6[%c0_12, %c0_13] : memref<1x32xf32, #tpu.memory_space<vmem>>, vector<1x32xf32>
    %cst_14 = arith.constant dense<0.000000e+00> : vector<1x8xf32>
    %17 = tpu.matmul %16, %15, %cst_14 {dimension_numbers = #tpu.dot_dimension_numbers<[1], [0], [0], [1], [0, 0, 1, 1], [], []>} : vector<1x32xf32>, vector<32x8xf32>, vector<1x8xf32> -> vector<1x8xf32>
    %c0_15 = arith.constant 0 : index
    %c0_16 = arith.constant 0 : index
    %18 = memref.load %arg7[%c0_15, %c0_16] : memref<1x1xf32, #tpu.memory_space<smem>>
    %19 = vector.broadcast %18 : f32 to vector<1x8xf32>
    %20 = arith.addf %17, %19 : vector<1x8xf32>
    %c0_17 = arith.constant 0 : index
    %c0_18 = arith.constant 0 : index
    %21 = vector.load %arg8[%c0_17, %c0_18] : memref<1x8xf32, #tpu.memory_space<vmem>>, vector<1x8xf32>
    tpu.vector_store %arg8[%c0_17, %c0_18], %20 {strides = array<i32>} : memref<1x8xf32, #tpu.memory_space<vmem>>, vector<1x8xf32>,
    return
  }
  func.func @transform_0(%arg0: i32) -> (i32, i32) {
    %c0_i32 = arith.constant 0 : i32
    %c0_i32_0 = arith.constant 0 : i32
    return %c0_i32, %arg0 : i32, i32
  }
  func.func @transform_1(%arg0: i32) -> (i32, i32) {
    %c0_i32 = arith.constant 0 : i32
    %c0_i32_0 = arith.constant 0 : i32
    %c0_i32_1 = arith.constant 0 : i32
    return %c0_i32, %c0_i32_0 : i32, i32
  }
  func.func @transform_2(%arg0: i32) -> (i32, i32) {
    %c0_i32 = arith.constant 0 : i32
    %c0_i32_0 = arith.constant 0 : i32
    %c0_i32_1 = arith.constant 0 : i32
    return %c0_i32, %c0_i32_0 : i32, i32
  }
  func.func @transform_3(%arg0: i32) -> (i32, i32) {
    %c0_i32 = arith.constant 0 : i32
    %c0_i32_0 = arith.constant 0 : i32
    %c0_i32_1 = arith.constant 0 : i32
    return %c0_i32, %c0_i32_0 : i32, i32
  }
  func.func @transform_4(%arg0: i32) -> (i32, i32) {
    %c0_i32 = arith.constant 0 : i32
    %c0_i32_0 = arith.constant 0 : i32
    %c0_i32_1 = arith.constant 0 : i32
    return %c0_i32, %c0_i32_0 : i32, i32
  }
  func.func @transform_5(%arg0: i32) -> (i32, i32) {
    %c0_i32 = arith.constant 0 : i32
    %c0_i32_0 = arith.constant 0 : i32
    %c0_i32_1 = arith.constant 0 : i32
    return %c0_i32, %c0_i32_0 : i32, i32
  }
  func.func @transform_6(%arg0: i32) -> (i32, i32) {
    %c0_i32 = arith.constant 0 : i32
    %c0_i32_0 = arith.constant 0 : i32
    %c0_i32_1 = arith.constant 0 : i32
    return %c0_i32, %c0_i32_0 : i32, i32
  }
  func.func @transform_7(%arg0: i32) -> (i32, i32) {
    %c0_i32 = arith.constant 0 : i32
    %c0_i32_0 = arith.constant 0 : i32
    return %c0_i32, %arg0 : i32, i32
  }
}

</mosaic_0001>

<llo_original>
// kernel: tpu_custom_call.1
$region0: #{tpu_custom_call.1}
  #allocation0 [shape = 'u32[]', space=smem, size = 0x4, offset = 0x4, fixed_abs, tag = 'smem constant byte address 0x4 - core index']
  #allocation1 [shape = 'u32[72,128]{1,0:T(1,128)}', space=vmem, size = 0x9000, scoped, tag = 'internal scratch']
  #allocation2 [shape = 'f32[1,1]{1,0:T(1,128)S(6)}', space=smem, size = 0x200, scoped, tag = 'scoped memory for tpu_custom_call.1']
  %s0 = inlined_call_operand.vmem [shape: bf16[32,8], index: 0, kind: input, shape index: {}]
  %s1 = inlined_call_operand.vmem [shape: bf16[64,32], index: 1, kind: input, shape index: {}]
  %s2 = inlined_call_operand.vmem [shape: f32[64,1], index: 2, kind: input, shape index: {}]
  %s3 = inlined_call_operand.vmem [shape: bf16[32,64], index: 3, kind: input, shape index: {}]
  %s4 = inlined_call_operand.vmem [shape: f32[32,1], index: 4, kind: input, shape index: {}]
  %s5 = inlined_call_operand.vmem [shape: f32[1,32], index: 5, kind: input, shape index: {}]
  %s6 = inlined_call_operand.<no memory space> [shape: f32[1,1], index: 6, kind: input, shape index: {}]
  %s7 = inlined_call_operand.hbm [shape: f32[1,8], index: 7, kind: output, shape index: {}]
  %s8 = sld [smem:[#allocation0]]
  $region38: #{tpu_custom_call.1} parent=0
    _
  %s10 = ssub.s32 1, %s8
  %s11 = scalar_select 0, %s10, %s8
  %12 = sst [smem:[#allocation2]] %s6
  $region1: #{tpu_custom_call.1} parent=0
    #allocation3 [shape = 'u8[512]{0}', space=vmem, size = 0x400, scoped, tag = 'output window, operand 0, single buffered']
    #allocation4 [shape = 's32[1]{0}', space=sflag, size = 0x4, scoped, tag = 'scoped memory for tpu_custom_call.1']
    %13 = vsyncpa [#allocation4], 0
    // Predicated region
    $region2: #{tpu_custom_call.1} parent=1 // pred_check
      _
    $region3: #{tpu_custom_call.1} parent=1 // pred_check_branch
      %15 = sbr.rel (0) target = $region5
    $region4: #{tpu_custom_call.1} parent=1 // pred_region
      _
    $region5: #{tpu_custom_call.1} parent=1 // pred_fallthru
      _
    // Predicated region
    $region6: #{tpu_custom_call.1} parent=1 // pred_check
      _
    $region7: #{tpu_custom_call.1} parent=1 // pred_check_branch
      %17 = sbr.rel (0) target = $region9
    $region8: #{tpu_custom_call.1} parent=1 // pred_region
      _
    $region9: #{tpu_custom_call.1} parent=1 // pred_fallthru
      _
    // Predicated region
    $region10: #{tpu_custom_call.1} parent=1 // pred_check
      _
    $region11: #{tpu_custom_call.1} parent=1 // pred_check_branch
      %19 = sbr.rel (0) target = $region13
    $region12: #{tpu_custom_call.1} parent=1 // pred_region
      _
    $region13: #{tpu_custom_call.1} parent=1 // pred_fallthru
      _
    // Predicated region
    $region14: #{tpu_custom_call.1} parent=1 // pred_check
      _
    $region15: #{tpu_custom_call.1} parent=1 // pred_check_branch
      %21 = sbr.rel (0) target = $region17
    $region16: #{tpu_custom_call.1} parent=1 // pred_region
      _
    $region17: #{tpu_custom_call.1} parent=1 // pred_fallthru
      _
    // Predicated region
    $region18: #{tpu_custom_call.1} parent=1 // pred_check
      _
    $region19: #{tpu_custom_call.1} parent=1 // pred_check_branch
      %23 = sbr.rel (0) target = $region21
    $region20: #{tpu_custom_call.1} parent=1 // pred_region
      _
    $region21: #{tpu_custom_call.1} parent=1 // pred_fallthru
      _
    // Predicated region
    $region22: #{tpu_custom_call.1} parent=1 // pred_check
      _
    $region23: #{tpu_custom_call.1} parent=1 // pred_check_branch
      %25 = sbr.rel (0) target = $region25
    $region24: #{tpu_custom_call.1} parent=1 // pred_region
      _
    $region25: #{tpu_custom_call.1} parent=1 // pred_fallthru
      _
    // Predicated region
    $region26: #{tpu_custom_call.1} parent=1 // pred_check
      _
    $region27: #{tpu_custom_call.1} parent=1 // pred_check_branch
      %27 = sbr.rel (0) target = $region29
    $region28: #{tpu_custom_call.1} parent=1 // pred_region
      _
    $region29: #{tpu_custom_call.1} parent=1 // pred_fallthru
      _
    %v29 = vld [vmem:[%s1] sm:$0xf]
    %v30 = vld [vmem:[%s1 + $0x4] sm:$0xf]
    %v31 = vld [vmem:[%s1 + $0x8] sm:$0xf]
    %v32 = vld [vmem:[%s1 + $0xc] sm:$0xf]
    %v33 = vld [vmem:[%s1 + $0x10] sm:$0xf]
    %v34 = vld [vmem:[%s1 + $0x14] sm:$0xf]
    %v35 = vld [vmem:[%s1 + $0x18] sm:$0xf]
    %v36 = vld [vmem:[%s1 + $0x1c] sm:$0xf]
    %v37 = vld [vmem:[%s0] sm:$0xf]
    %v38 = vld [vmem:[%s0 + $0x4] sm:$0xf]
    %v39 = vld [vmem:[%s0 + $0x8] sm:$0xf]
    %v40 = vld [vmem:[%s0 + $0xc] sm:$0xf]
    %v41 = vld [vmem:[%s2] sm:$0xff]
    %v42 = vld [vmem:[%s2 + $0x8] sm:$0xff]
    %v43 = vld [vmem:[%s2 + $0x10] sm:$0xff]
    %v44 = vld [vmem:[%s2 + $0x18] sm:$0xff]
    %v45 = vld [vmem:[%s2 + $0x20] sm:$0xff]
    %v46 = vld [vmem:[%s2 + $0x28] sm:$0xff]
    %v47 = vld [vmem:[%s2 + $0x30] sm:$0xff]
    %v48 = vld [vmem:[%s2 + $0x38] sm:$0xff]
    %50 = vset.pattern.permute.xlu0 0
    %51 = vperm.xlu0 %50, %v41
    %v52 = vpop.permute.xlu0 %51
    %55 = vset.pattern.permute.xlu0 0
    %56 = vperm.xlu0 %55, %v42
    %v57 = vpop.permute.xlu0 %56
    %60 = vset.pattern.permute.xlu0 0
    %61 = vperm.xlu0 %60, %v43
    %v62 = vpop.permute.xlu0 %61
    %65 = vset.pattern.permute.xlu0 0
    %66 = vperm.xlu0 %65, %v44
    %v67 = vpop.permute.xlu0 %66
    %70 = vset.pattern.permute.xlu0 0
    %71 = vperm.xlu0 %70, %v45
    %v72 = vpop.permute.xlu0 %71
    %75 = vset.pattern.permute.xlu0 0
    %76 = vperm.xlu0 %75, %v46
    %v77 = vpop.permute.xlu0 %76
    %80 = vset.pattern.permute.xlu0 0
    %81 = vperm.xlu0 %80, %v47
    %v82 = vpop.permute.xlu0 %81
    %85 = vset.pattern.permute.xlu0 0
    %86 = vperm.xlu0 %85, %v48
    %v87 = vpop.permute.xlu0 %86
    %v97 = vunpack.c.l.b16 %v29
    %v98 = vunpack.c.l.b16 %v30
    %v99 = vunpack.c.l.b16 %v31
    %v100 = vunpack.c.l.b16 %v32
    %v101 = vunpack.c.l.b16 %v33
    %v102 = vunpack.c.l.b16 %v34
    %v103 = vunpack.c.l.b16 %v35
    %v104 = vunpack.c.l.b16 %v36
    %v105 = vpack.c.b16 %v98, %v97
    %v106 = vpack.c.b16 %v100, %v99
    %v107 = vpack.c.b16 %v102, %v101
    %v108 = vpack.c.b16 %v104, %v103
    %v113 = vunpack.c.l.b16 %v37
    %v114 = vunpack.c.l.b16 %v38
    %v115 = vunpack.c.l.b16 %v39
    %v116 = vunpack.c.l.b16 %v40
    %v117 = vpack.c.b16 %v114, %v113
    %v118 = vpack.c.b16 %v116, %v115
    %vm121 = vcmask 261120
    %v123 = vsel %vm121, %v105, 0
    %v126 = vsel %vm121, %v106, 0
    %v129 = vsel %vm121, %v107, 0
    %v132 = vsel %vm121, %v108, 0
    %134 = vmatpush.bf16.msra.mxu0 0
    %135 = vmatpush.bf16.msra.mxu0 0
    %136 = vmatpush.bf16.msra.mxu0 0
    %137 = vmatpush.bf16.msra.mxu0 0
    %138 = vmatpush.bf16.msra.mxu0 0
    %139 = vmatpush.bf16.msra.mxu0 0
    %140 = vmatpush.bf16.msra.mxu0 %v118
    %141 = vmatpush.bf16.msra.mxu0 %v117
    %142 = vmatmul.bf16.gmra.mxu0 %v123
    %v143 = vpop.f32.mrf.mxu0
    %v144 = vadd.f32 %v52, %v143
    %v145 = vpop.f32.mrf.mxu0
    %v146 = vadd.f32 %v57, %v145
    %147 = vmatmul.bf16.gmra.mxu0 %v126
    %v148 = vpop.f32.mrf.mxu0
    %v149 = vadd.f32 %v62, %v148
    %v150 = vpop.f32.mrf.mxu0
    %v151 = vadd.f32 %v67, %v150
    %152 = vmatmul.bf16.gmra.mxu0 %v129
    %v153 = vpop.f32.mrf.mxu0
    %v154 = vadd.f32 %v72, %v153
    %v155 = vpop.f32.mrf.mxu0
    %v156 = vadd.f32 %v77, %v155
    %157 = vmatmul.bf16.gmra.mxu0 %v132
    %v158 = vpop.f32.mrf.mxu0
    %v159 = vadd.f32 %v82, %v158
    %v160 = vpop.f32.mrf.mxu0
    %v161 = vadd.f32 %v87, %v160
    %162 = vdwg.mxu0
    %v163 = vmax.f32 %v144, 0.0
    %v164 = vmax.f32 %v146, 0.0
    %v165 = vmax.f32 %v149, 0.0
    %v166 = vmax.f32 %v151, 0.0
    %v167 = vmax.f32 %v154, 0.0
    %v168 = vmax.f32 %v156, 0.0
    %v169 = vmax.f32 %v159, 0.0
    %v170 = vmax.f32 %v161, 0.0
    %v171 = vld [vmem:[%s3] sm:$0xf]
    %v172 = vld [vmem:[%s3 + $0x4] sm:$0xf]
    %v173 = vld [vmem:[%s3 + $0x8] sm:$0xf]
    %v174 = vld [vmem:[%s3 + $0xc] sm:$0xf]
    %v175 = vpack.c.bf16 %v164, %v163
    %v176 = vpack.c.bf16 %v166, %v165
    %v177 = vpack.c.bf16 %v168, %v167
    %v178 = vpack.c.bf16 %v170, %v169
    %v179 = vld [vmem:[%s4] sm:$0xff]
    %v180 = vld [vmem:[%s4 + $0x8] sm:$0xff]
    %v181 = vld [vmem:[%s4 + $0x10] sm:$0xff]
    %v182 = vld [vmem:[%s4 + $0x18] sm:$0xff]
    %184 = vset.pattern.permute.xlu0 0
    %185 = vperm.xlu0 %184, %v179
    %v186 = vpop.permute.xlu0 %185
    %189 = vset.pattern.permute.xlu0 0
    %190 = vperm.xlu0 %189, %v180
    %v191 = vpop.permute.xlu0 %190
    %194 = vset.pattern.permute.xlu0 0
    %195 = vperm.xlu0 %194, %v181
    %v196 = vpop.permute.xlu0 %195
    %199 = vset.pattern.permute.xlu0 0
    %200 = vperm.xlu0 %199, %v182
    %v201 = vpop.permute.xlu0 %200
    %v207 = vunpack.c.l.b16 %v171
    %v208 = vunpack.c.l.b16 %v172
    %v209 = vunpack.c.l.b16 %v173
    %v210 = vunpack.c.l.b16 %v174
    %v211 = vpack.c.b16 %v208, %v207
    %v212 = vpack.c.b16 %v210, %v209
    %vm213 = vcmask 523264
    %v215 = vsel %vm213, %v211, 0
    %v218 = vsel %vm213, %v212, 0
    %220 = vmatpush.bf16.msra.mxu0 0
    %221 = vmatpush.bf16.msra.mxu0 0
    %222 = vmatpush.bf16.msra.mxu0 0
    %223 = vmatpush.bf16.msra.mxu0 0
    %224 = vmatpush.bf16.msra.mxu0 %v178
    %225 = vmatpush.bf16.msra.mxu0 %v177
    %226 = vmatpush.bf16.msra.mxu0 %v176
    %227 = vmatpush.bf16.msra.mxu0 %v175
    %228 = vmatmul.bf16.gmra.mxu0 %v215
    %v229 = vpop.f32.mrf.mxu0
    %v230 = vadd.f32 %v186, %v229
    %v231 = vpop.f32.mrf.mxu0
    %v232 = vadd.f32 %v191, %v231
    %233 = vmatmul.bf16.gmra.mxu0 %v218
    %v234 = vpop.f32.mrf.mxu0
    %v235 = vadd.f32 %v196, %v234
    %v236 = vpop.f32.mrf.mxu0
    %v237 = vadd.f32 %v201, %v236
    %238 = vdwg.mxu0
    %v239 = vmax.f32 %v230, 0.0
    %v240 = vmax.f32 %v232, 0.0
    %v241 = vmax.f32 %v235, 0.0
    %v242 = vmax.f32 %v237, 0.0
    %v243 = vld [vmem:[%s5] sm:$0x1]
    %s244 = sld [smem:[#allocation2]]
    %v245 = vstv %s244
    %v247 = vsel %vm121, %v243, 0
    %249 = vmatpush.msra.mxu0 0.0
    %250 = vmatpush.msra.mxu0 0.0
    %251 = vmatpush.msra.mxu0 0.0
    %252 = vmatpush.msra.mxu0 0.0
    %253 = vmatpush.msra.mxu0 0.0
    %254 = vmatpush.msra.mxu0 0.0
    %255 = vmatpush.msra.mxu0 0.0
    %256 = vmatpush.msra.mxu0 0.0
    %257 = vmatpush.msra.mxu0 0.0
    %258 = vmatpush.msra.mxu0 0.0
    %259 = vmatpush.msra.mxu0 0.0
    %260 = vmatpush.msra.mxu0 0.0
    %261 = vmatpush.msra.mxu0 %v242
    %262 = vmatpush.msra.mxu0 %v241
    %263 = vmatpush.msra.mxu0 %v240
    %264 = vmatpush.msra.mxu0 %v239
    %265 = vmatmul.f32.gmra.mxu0 %v247
    %v266 = vpop.f32.mrf.mxu0
    %v267 = vadd.f32 %v245, %v266
    %268 = vdwg.mxu0
    %vm269 = vcmask 57344
    %270 = vst.msk [vmem:[#allocation3] sm:$0x1] %vm269, %v267
    // Predicated region
    $region30: #{tpu_custom_call.1} parent=1 // pred_check
      _
    $region31: #{tpu_custom_call.1} parent=1 // pred_check_branch
      %272 = sbr.rel (0) target = $region33
    $region32: #{tpu_custom_call.1} parent=1 // pred_region
      %274 = vsyncadd [#allocation4], 0
      %s276 = sshll.u32 [#allocation3], 4
      %s277 = int_to_ptr.vmem [resolvable:$true] %s276
      %s278 = sshll.u32 %s7, 4
      %s279 = int_to_ptr.hbm [resolvable:$true] %s278
      %281 = dma.vmem_to_hbm [thread:$0]  %s277, 16, %s279, [#allocation4]
    $region33: #{tpu_custom_call.1} parent=1 // pred_fallthru
      _
    // Predicated region
    $region34: #{tpu_custom_call.1} parent=1 // pred_check
      _
    $region35: #{tpu_custom_call.1} parent=1 // pred_check_branch
      %283 = sbr.rel (0) target = $region37
    $region36: #{tpu_custom_call.1} parent=1 // pred_region
      %285 = dma.done [#allocation4], 16
    $region37: #{tpu_custom_call.1} parent=1 // pred_fallthru
      _
    %286 = vsyncpa [#allocation4], 1

</llo_original>
